<compile_context>
chip_gen: v5e
topology: v5e:2x2
jax: 0.10.0
libtpu: 0.0.40
codegen_flags: <defaults>
</compile_context>

<pallas_src>
import functools

import jax
import jax.numpy as jnp
from jax.experimental import pallas as pl
from jax.experimental.pallas import tpu as pltpu

# ---- static packing layout ---------------------------------------------------------
_GATE = 128                  # lane-padded LSTM gate-group width (assumes 2*hidden <= 128)
_WCOL = 3 * _GATE            # packed weight-slab lane width (= fused LSTM gate width)
_C_PAD = 128                 # lane-dense classifier width (sliced back in the wrapper)
# Lane offsets of each bias inside the single packed bias row (all 128-aligned starts).
_B = dict(b1=0, b2=128, b3=256, bg=384, bb0=512, bb1=512 + _WCOL, bfc=512 + 2 * _WCOL)
_B_LANES = _B["bfc"] + _C_PAD            # 1408


def _round8(v):
    return -(-v // 8) * 8


def _row_offsets(num_features):
    """Sublane (row) offsets of each weight block inside the packed weight slab.
    Every block starts on an 8-row boundary so in-kernel slices are tile-aligned."""
    offs, r = {}, 0
    offs["w1"] = r
    r += _round8(num_features)
    offs["w2"] = r
    r += 64
    offs["w3"] = r
    r += 32
    offs["wg"] = r
    r += 32
    offs["l0"] = r
    r += 32
    offs["l1"] = r
    r += _GATE
    offs["fc"] = r
    r += _GATE
    offs["rows"] = r
    return offs


# ---- kernel -------------------------------------------------------------------------
def gcrnn_kernel(x_ref, a_ref, wp_ref, bp_ref, out_ref, *, num_features):
    F = num_features
    G = _GATE
    f32 = jnp.float32
    bf16 = jnp.bfloat16
    o = _row_offsets(F)

    a = a_ref[...]                       # (N, N) bf16, D^-1/2 (A+I) D^-1/2
    x = x_ref[...]                       # (N, F) f32

    # --- GCN layer 1, reassociated: relu((A @ X) @ W1 + b1)  (F << 64) ---
    ax = jnp.dot(a, x.astype(bf16), preferred_element_type=f32)            # (N, F)
    h = jnp.maximum(
        jnp.dot(ax, wp_ref[o["w1"]:o["w1"] + F, 0:64], preferred_element_type=f32)
        + bp_ref[:, _B["b1"]:_B["b1"] + 64], 0.0)                          # (N, 64)

    # --- GCN layers 2/3: relu(A @ (H @ W) + b), aggregation in bf16 ---
    def gcn(h, w, b):
        hw = jnp.dot(h, w, preferred_element_type=f32).astype(bf16)
        return jnp.maximum(jnp.dot(a, hw, preferred_element_type=f32) + b, 0.0)

    h = gcn(h, wp_ref[o["w2"]:o["w2"] + 64, 0:32], bp_ref[:, _B["b2"]:_B["b2"] + 32])
    h = gcn(h, wp_ref[o["w3"]:o["w3"] + 32, 0:32], bp_ref[:, _B["b3"]:_B["b3"] + 32])

    # --- GATConv, single head, PyG convention (message j -> i) ---
    # Node + attention projections fused: W_aug = [Wg | Wg@asrc | Wg@adst] -> (N, 34).
    hgs = jnp.dot(h, wp_ref[o["wg"]:o["wg"] + 32, 0:34], preferred_element_type=f32)
    hg = hgs[:, 0:32]                                                      # W x_j
    s_src_row = jnp.transpose(hgs[:, 32:33])                               # (1, N)
    e = hgs[:, 33:34] + s_src_row                                          # e[i, j]
    e = jnp.where(a > 0, jnp.maximum(e, 0.2 * e), -1e30)                   # LeakyReLU + mask
    e = e - jnp.max(e, axis=1, keepdims=True)
    p = jnp.exp(e)                                                         # masked -> exact 0
    inv_den = pl.reciprocal(jnp.sum(p, axis=1, keepdims=True), approx=True)
    alpha = (p * inv_den).astype(bf16)                                     # softmax over nbrs
    h = jnp.maximum(
        jnp.dot(alpha, hg.astype(bf16), preferred_element_type=f32)
        + bp_ref[:, _B["bg"]:_B["bg"] + 32], 0.0)                          # (N, 32)

    # --- bidirectional 2-layer LSTM, length-1 sequence, zero init state.
    #     W_hh @ h0 == 0 and f * c0 == 0, so each cell reduces to the input gates.
    #     Gate layout per layer: [i_f|i_b|0.. | g_f|g_b|0.. | o_f|o_b|0..], each group
    #     padded to 128 lanes -> all gate slices are lane-tile aligned and the padded
    #     lanes produce exact zeros (0.5 * tanh(0.5 * 0) = 0).
    def sigmoid(v):
        return 0.5 * jnp.tanh(0.5 * v) + 0.5

    def bilstm(inp, w, b):
        g = jnp.dot(inp, w, preferred_element_type=f32) + b                # (N, 3G)
        i = sigmoid(g[:, 0:G])
        gg = jnp.tanh(g[:, G:2 * G])
        og = sigmoid(g[:, 2 * G:3 * G])
        return og * jnp.tanh(i * gg)                                       # (N, G)

    h = bilstm(h, wp_ref[o["l0"]:o["l0"] + 32, :], bp_ref[:, _B["bb0"]:_B["bb0"] + 3 * G])
    h = bilstm(h, wp_ref[o["l1"]:o["l1"] + G, :], bp_ref[:, _B["bb1"]:_B["bb1"] + 3 * G])

    # --- dropout (identity, eval) + BatchNorm (folded into FC) + Linear (lane-padded) ---
    out_ref[...] = (
        jnp.dot(h, wp_ref[o["fc"]:o["fc"] + G, 0:_C_PAD], preferred_element_type=f32)
        + bp_ref[:, _B["bfc"]:_B["bfc"] + _C_PAD])


# ---- one-time parameter folding / packing --------------------------------------------
def _fuse_bilstm(w_f, w_b, b_f, b_b, H):
    """PyTorch gate order is [i | f | g | o]; drop f (c0 == 0), interleave the two
    directions per gate and zero-pad each gate group to _GATE lanes.
    w_*: (in, 4H); b_*: (4H,) = b_ih + b_hh.  Returns (in, 3*_GATE), (1, 3*_GATE)."""
    n_in = w_f.shape[0]

    def gates(w, b):
        return [(w[:, 0:H], b[0:H]),                 # i
                (w[:, 2 * H:3 * H], b[2 * H:3 * H]),  # g
                (w[:, 3 * H:4 * H], b[3 * H:4 * H])]  # o

    gf, gb = gates(w_f, b_f), gates(w_b, b_b)
    w_out = jnp.zeros((n_in, 3 * _GATE), jnp.float32)
    b_out = jnp.zeros((1, 3 * _GATE), jnp.float32)
    for k in range(3):
        wk = jnp.concatenate([gf[k][0], gb[k][0]], axis=1)          # (in, 2H)
        bk = jnp.concatenate([gf[k][1], gb[k][1]])[None, :]         # (1, 2H)
        w_out = w_out.at[:, k * _GATE:k * _GATE + 2 * H].set(wk)
        b_out = b_out.at[:, k * _GATE:k * _GATE + 2 * H].set(bk)
    return w_out, b_out


def pack_params(params, num_node_features, hidden_size, num_classes):
    """Algebraic folds + coalescing of all weights/biases into one (rows, 384) f32
    weight slab and one (1, 1408) f32 bias row -> two DMA descriptors total."""
    F, H, C = num_node_features, hidden_size, num_classes
    H2 = 2 * H
    offs = _row_offsets(F)

    # GAT: fuse the (32->1) src/dst attention projections into the node projection.
    w_aug = jnp.concatenate(
        [params["wg"], params["wg"] @ params["asrc"], params["wg"] @ params["adst"]], axis=1)

    # LSTM: dead forget gates dropped, directions interleaved, gate groups 128-padded.
    wih0, bb0 = _fuse_bilstm(params["w_f0"], params["w_b0"], params["b_f0"], params["b_b0"], H)
    wih1, bb1 = _fuse_bilstm(params["w_f1"], params["w_b1"], params["b_f1"], params["b_b1"], H)

    # Fold eval-mode BatchNorm into the classifier (exact): y = (r*s + t) @ W + b
    #   -> r @ (diag(s) W) + (t @ W + b)
    wfc_bn = params["wfc"] * params["bn_scale"].reshape(-1, 1)            # (2H, C)
    bfc_bn = params["bfc"] + params["bn_shift"] @ params["wfc"]           # (1, C)

    wpack = jnp.zeros((offs["rows"], _WCOL), jnp.float32)
    wpack = wpack.at[offs["w1"]:offs["w1"] + F, 0:64].set(params["w1"])
    wpack = wpack.at[offs["w2"]:offs["w2"] + 64, 0:32].set(params["w2"])
    wpack = wpack.at[offs["w3"]:offs["w3"] + 32, 0:32].set(params["w3"])
    wpack = wpack.at[offs["wg"]:offs["wg"] + 32, 0:34].set(w_aug)
    wpack = wpack.at[offs["l0"]:offs["l0"] + 32, :].set(wih0)
    wpack = wpack.at[offs["l1"]:offs["l1"] + H2, :].set(wih1)             # rows 2H..128 stay 0
    wpack = wpack.at[offs["fc"]:offs["fc"] + H2, 0:C].set(wfc_bn)         # rows 2H..128 stay 0

    bpack = jnp.zeros((1, _B_LANES), jnp.float32)
    bpack = bpack.at[:, _B["b1"]:_B["b1"] + 64].set(params["b1"])
    bpack = bpack.at[:, _B["b2"]:_B["b2"] + 32].set(params["b2"])
    bpack = bpack.at[:, _B["b3"]:_B["b3"] + 32].set(params["b3"])
    bpack = bpack.at[:, _B["bg"]:_B["bg"] + 32].set(params["bg"])
    bpack = bpack.at[:, _B["bb0"]:_B["bb0"] + _WCOL].set(bb0)
    bpack = bpack.at[:, _B["bb1"]:_B["bb1"] + _WCOL].set(bb1)
    bpack = bpack.at[:, _B["bfc"]:_B["bfc"] + C].set(bfc_bn)
    return wpack, bpack


# ---- init + wrapper -------------------------------------------------------------------
def init_params(key, num_node_features, num_classes, hidden_size):
    H = hidden_size
    ks = jax.random.split(key, 24)

    def glorot(k, shape):
        s = jnp.sqrt(2.0 / (shape[0] + shape[-1]))
        return (jax.random.normal(k, shape) * s).astype(jnp.float32)

    p = {}
    p["w1"] = glorot(ks[0], (num_node_features, 64))
    p["b1"] = 0.1 * glorot(ks[1], (1, 64))
    p["w2"] = glorot(ks[2], (64, 32))
    p["b2"] = 0.1 * glorot(ks[3], (1, 32))
    p["w3"] = glorot(ks[4], (32, 32))
    p["b3"] = 0.1 * glorot(ks[5], (1, 32))
    p["wg"] = glorot(ks[6], (32, 32))
    p["asrc"] = glorot(ks[7], (32, 1))
    p["adst"] = glorot(ks[8], (32, 1))
    p["bg"] = 0.1 * glorot(ks[9], (1, 32))

    # LSTM per-direction PyTorch-style (in, 4H) weights; biases are b_ih + b_hh summed.
    p["w_f0"] = glorot(ks[10], (32, 4 * H))
    p["w_b0"] = glorot(ks[11], (32, 4 * H))
    p["b_f0"] = 0.1 * jax.random.normal(ks[12], (4 * H,), jnp.float32)
    p["b_b0"] = 0.1 * jax.random.normal(ks[13], (4 * H,), jnp.float32)
    p["w_f1"] = glorot(ks[14], (2 * H, 4 * H))
    p["w_b1"] = glorot(ks[15], (2 * H, 4 * H))
    p["b_f1"] = 0.1 * jax.random.normal(ks[16], (4 * H,), jnp.float32)
    p["b_b1"] = 0.1 * jax.random.normal(ks[17], (4 * H,), jnp.float32)

    # BatchNorm1d(2H) eval mode, default running stats (mean=0, var=1), gamma=1, beta=0.
    eps = 1e-5
    gamma = jnp.ones((1, 2 * H), jnp.float32)
    beta = jnp.zeros((1, 2 * H), jnp.float32)
    running_mean = jnp.zeros((1, 2 * H), jnp.float32)
    running_var = jnp.ones((1, 2 * H), jnp.float32)
    p["bn_scale"] = gamma / jnp.sqrt(running_var + eps)
    p["bn_shift"] = beta - running_mean * p["bn_scale"]

    p["wfc"] = glorot(ks[18], (2 * H, num_classes))
    p["bfc"] = 0.1 * glorot(ks[19], (1, num_classes))
    return p


def advanced_gcrnn_forward(x, edge_index, params, hidden_size):
    N, F = x.shape
    C = params["wfc"].shape[1]
    assert 2 * hidden_size <= _GATE, "gate-padding scheme assumes 2*hidden_size <= 128"
    assert C <= _C_PAD

    # Glue: dense adjacency with self loops + symmetric GCN normalization.
    # (Multi-edges are de-duplicated; PyG would count multiplicities.)
    src, dst = edge_index[0], edge_index[1]
    A = jnp.zeros((N, N), jnp.float32).at[dst, src].set(1.0)
    A = A.at[jnp.arange(N), jnp.arange(N)].set(1.0)          # self loops (GCN & GAT default)
    deg = jnp.sum(A, axis=1)
    dinv = 1.0 / jnp.sqrt(deg)
    a_gcn = (A * dinv[:, None] * dinv[None, :]).astype(jnp.bfloat16)

    wpack, bpack = pack_params(params, F, hidden_size, C)

    out_pad = pl.pallas_call(
        functools.partial(gcrnn_kernel, num_features=F),
        out_shape=jax.ShapeDtypeStruct((N, _C_PAD), jnp.float32),
        in_specs=[pl.BlockSpec(memory_space=pltpu.MemorySpace.VMEM)] * 4,
        out_specs=pl.BlockSpec(memory_space=pltpu.MemorySpace.VMEM),
        compiler_params=pltpu.CompilerParams(vmem_limit_bytes=32 * 1024 * 1024),
    )(x.astype(jnp.float32), a_gcn, wpack, bpack)
    return out_pad[:, :C]


if __name__ == "__main__":
    # Small shapes implied by the module: N nodes, node features F, classes C,
    # hidden H=32, rnn_layers=2 (fixed in-kernel).
    N, F, C, H = 16, 8, 4, 32
    key = jax.random.PRNGKey(0)
    kx, kp = jax.random.split(key)

    x = jax.random.normal(kx, (N, F), jnp.float32)
    # Deterministic ring graph (bidirected) with a couple of chords.
    ring_src = jnp.arange(N)
    ring_dst = (jnp.arange(N) + 1) % N
    chord_src = jnp.array([0, 4, 8, 12])
    chord_dst = jnp.array([8, 12, 0, 4])
    src = jnp.concatenate([ring_src, ring_dst, chord_src, chord_dst])
    dst = jnp.concatenate([ring_dst, ring_src, chord_dst, chord_src])
    edge_index = jnp.stack([src, dst]).astype(jnp.int32)

    params = init_params(kp, F, C, H)
    out = advanced_gcrnn_forward(x, edge_index, params, H)
    out = jax.block_until_ready(out)
    assert out.shape == (N, C) and out.dtype == jnp.float32
    assert bool(jnp.all(jnp.isfinite(out)))
    print("KERNEL_OK")
</pallas_src>

<mosaic_0001>
module attributes {stable_mosaic.version = 11 : i64} {
  func.func @gcrnn_kernel(%arg0: memref<16x8xf32, #tpu.memory_space<vmem>>, %arg1: memref<16x16xbf16, #tpu.memory_space<vmem>>, %arg2: memref<424x384xf32, #tpu.memory_space<vmem>>, %arg3: memref<1x1408xf32, #tpu.memory_space<vmem>>, %arg4: memref<16x128xf32, #tpu.memory_space<vmem>>) attributes {dimension_semantics = [], scalar_prefetch = 0 : i64, scratch_operands = 0 : i64, tpu.core_type = #tpu.core_type<tc>} {
    %c0 = arith.constant 0 : index
    %c0_0 = arith.constant 0 : index
    %0 = vector.load %arg1[%c0, %c0_0] : memref<16x16xbf16, #tpu.memory_space<vmem>>, vector<16x16xbf16>
    %c0_1 = arith.constant 0 : index
    %c0_2 = arith.constant 0 : index
    %1 = vector.load %arg0[%c0_1, %c0_2] : memref<16x8xf32, #tpu.memory_space<vmem>>, vector<16x8xf32>
    %2 = arith.truncf %1 : vector<16x8xf32> to vector<16x8xbf16>
    %cst = arith.constant dense<0.000000e+00> : vector<16x8xf32>
    %3 = tpu.matmul %0, %2, %cst {dimension_numbers = #tpu.dot_dimension_numbers<[1], [0], [0], [1], [0, 0, 1, 1], [], []>} : vector<16x16xbf16>, vector<16x8xbf16>, vector<16x8xf32> -> vector<16x8xf32>
    %c0_3 = arith.constant 0 : index
    %c0_4 = arith.constant 0 : index
    %4 = vector.load %arg2[%c0_3, %c0_4] : memref<424x384xf32, #tpu.memory_space<vmem>>, vector<8x64xf32>
    %cst_5 = arith.constant dense<0.000000e+00> : vector<16x64xf32>
    %5 = tpu.matmul %3, %4, %cst_5 {dimension_numbers = #tpu.dot_dimension_numbers<[1], [0], [0], [1], [0, 0, 1, 1], [], []>} : vector<16x8xf32>, vector<8x64xf32>, vector<16x64xf32> -> vector<16x64xf32>
    %c0_6 = arith.constant 0 : index
    %c0_7 = arith.constant 0 : index
    %6 = vector.load %arg3[%c0_6, %c0_7] : memref<1x1408xf32, #tpu.memory_space<vmem>>, vector<1x64xf32>
    %7 = vector.broadcast %6 : vector<1x64xf32> to vector<16x64xf32>
    %8 = arith.addf %5, %7 : vector<16x64xf32>
    %cst_8 = arith.constant 0.000000e+00 : f32
    %9 = vector.broadcast %cst_8 : f32 to vector<16x64xf32>
    %10 = arith.maximumf %8, %9 : vector<16x64xf32>
    %c8 = arith.constant 8 : index
    %c0_9 = arith.constant 0 : index
    %11 = vector.load %arg2[%c8, %c0_9] : memref<424x384xf32, #tpu.memory_space<vmem>>, vector<64x32xf32>
    %c0_10 = arith.constant 0 : index
    %c128 = arith.constant 128 : index
    %12 = vector.load %arg3[%c0_10, %c128] : memref<1x1408xf32, #tpu.memory_space<vmem>>, vector<1x32xf32>
    %cst_11 = arith.constant dense<0.000000e+00> : vector<16x32xf32>
    %13 = tpu.matmul %10, %11, %cst_11 {dimension_numbers = #tpu.dot_dimension_numbers<[1], [0], [0], [1], [0, 0, 1, 1], [], []>} : vector<16x64xf32>, vector<64x32xf32>, vector<16x32xf32> -> vector<16x32xf32>
    %14 = arith.truncf %13 : vector<16x32xf32> to vector<16x32xbf16>
    %cst_12 = arith.constant dense<0.000000e+00> : vector<16x32xf32>
    %15 = tpu.matmul %0, %14, %cst_12 {dimension_numbers = #tpu.dot_dimension_numbers<[1], [0], [0], [1], [0, 0, 1, 1], [], []>} : vector<16x16xbf16>, vector<16x32xbf16>, vector<16x32xf32> -> vector<16x32xf32>
    %16 = vector.broadcast %12 : vector<1x32xf32> to vector<16x32xf32>
    %17 = arith.addf %15, %16 : vector<16x32xf32>
    %cst_13 = arith.constant 0.000000e+00 : f32
    %18 = vector.broadcast %cst_13 : f32 to vector<16x32xf32>
    %19 = arith.maximumf %17, %18 : vector<16x32xf32>
    %c72 = arith.constant 72 : index
    %c0_14 = arith.constant 0 : index
    %20 = vector.load %arg2[%c72, %c0_14] : memref<424x384xf32, #tpu.memory_space<vmem>>, vector<32x32xf32>
    %c0_15 = arith.constant 0 : index
    %c256 = arith.constant 256 : index
    %21 = vector.load %arg3[%c0_15, %c256] : memref<1x1408xf32, #tpu.memory_space<vmem>>, vector<1x32xf32>
    %cst_16 = arith.constant dense<0.000000e+00> : vector<16x32xf32>
    %22 = tpu.matmul %19, %20, %cst_16 {dimension_numbers = #tpu.dot_dimension_numbers<[1], [0], [0], [1], [0, 0, 1, 1], [], []>} : vector<16x32xf32>, vector<32x32xf32>, vector<16x32xf32> -> vector<16x32xf32>
    %23 = arith.truncf %22 : vector<16x32xf32> to vector<16x32xbf16>
    %cst_17 = arith.constant dense<0.000000e+00> : vector<16x32xf32>
    %24 = tpu.matmul %0, %23, %cst_17 {dimension_numbers = #tpu.dot_dimension_numbers<[1], [0], [0], [1], [0, 0, 1, 1], [], []>} : vector<16x16xbf16>, vector<16x32xbf16>, vector<16x32xf32> -> vector<16x32xf32>
    %25 = vector.broadcast %21 : vector<1x32xf32> to vector<16x32xf32>
    %26 = arith.addf %24, %25 : vector<16x32xf32>
    %cst_18 = arith.constant 0.000000e+00 : f32
    %27 = vector.broadcast %cst_18 : f32 to vector<16x32xf32>
    %28 = arith.maximumf %26, %27 : vector<16x32xf32>
    %c104 = arith.constant 104 : index
    %c0_19 = arith.constant 0 : index
    %29 = vector.load %arg2[%c104, %c0_19] : memref<424x384xf32, #tpu.memory_space<vmem>>, vector<32x34xf32>
    %cst_20 = arith.constant dense<0.000000e+00> : vector<16x34xf32>
    %30 = tpu.matmul %28, %29, %cst_20 {dimension_numbers = #tpu.dot_dimension_numbers<[1], [0], [0], [1], [0, 0, 1, 1], [], []>} : vector<16x32xf32>, vector<32x34xf32>, vector<16x34xf32> -> vector<16x34xf32>
    %31 = vector.extract_strided_slice %30 {offsets = [0, 0], sizes = [16, 32], strides = [1, 1]} : vector<16x34xf32> to vector<16x32xf32>
    %32 = vector.extract_strided_slice %30 {offsets = [0, 32], sizes = [16, 1], strides = [1, 1]} : vector<16x34xf32> to vector<16x1xf32>
    %33 = tpu.transpose %32, [1, 0] : vector<16x1xf32> -> vector<1x16xf32>
    %34 = vector.extract_strided_slice %30 {offsets = [0, 33], sizes = [16, 1], strides = [1, 1]} : vector<16x34xf32> to vector<16x1xf32>
    %35 = vector.broadcast %34 : vector<16x1xf32> to vector<16x16xf32>
    %36 = vector.broadcast %33 : vector<1x16xf32> to vector<16x16xf32>
    %37 = arith.addf %35, %36 : vector<16x16xf32>
    %cst_21 = arith.constant 0.000000e+00 : bf16
    %38 = vector.broadcast %cst_21 : bf16 to vector<16x16xbf16>
    %39 = arith.cmpf ogt, %0, %38 : vector<16x16xbf16>
    %cst_22 = arith.constant 2.000000e-01 : f32
    %40 = vector.broadcast %cst_22 : f32 to vector<16x16xf32>
    %41 = arith.mulf %40, %37 : vector<16x16xf32>
    %42 = arith.maximumf %37, %41 : vector<16x16xf32>
    %cst_23 = arith.constant -1.000000e+30 : f32
    %43 = vector.broadcast %cst_23 : f32 to vector<16x16xf32>
    %44 = arith.select %39, %42, %43 : vector<16x16xi1>, vector<16x16xf32>
    %cst_24 = arith.constant dense<0xFF800000> : vector<16xf32>
    %45 = vector.multi_reduction <maximumf>, %44, %cst_24 [1] : vector<16x16xf32> to vector<16xf32>
    %46 = vector.shape_cast %45 : vector<16xf32> to vector<16x1xf32>
    %47 = vector.broadcast %46 : vector<16x1xf32> to vector<16x16xf32>
    %48 = arith.subf %44, %47 : vector<16x16xf32>
    %49 = math.exp %48 : vector<16x16xf32>
    %cst_25 = arith.constant dense<0.000000e+00> : vector<16xf32>
    %50 = vector.multi_reduction <add>, %49, %cst_25 [1] : vector<16x16xf32> to vector<16xf32>
    %51 = vector.shape_cast %50 : vector<16xf32> to vector<16x1xf32>
    %52 = tpu.reciprocal %51 {approx = true} : vector<16x1xf32> -> vector<16x1xf32>
    %53 = vector.broadcast %52 : vector<16x1xf32> to vector<16x16xf32>
    %54 = arith.mulf %49, %53 : vector<16x16xf32>
    %55 = arith.truncf %54 : vector<16x16xf32> to vector<16x16xbf16>
    %56 = arith.truncf %31 : vector<16x32xf32> to vector<16x32xbf16>
    %cst_26 = arith.constant dense<0.000000e+00> : vector<16x32xf32>
    %57 = tpu.matmul %55, %56, %cst_26 {dimension_numbers = #tpu.dot_dimension_numbers<[1], [0], [0], [1], [0, 0, 1, 1], [], []>} : vector<16x16xbf16>, vector<16x32xbf16>, vector<16x32xf32> -> vector<16x32xf32>
    %c0_27 = arith.constant 0 : index
    %c384 = arith.constant 384 : index
    %58 = vector.load %arg3[%c0_27, %c384] : memref<1x1408xf32, #tpu.memory_space<vmem>>, vector<1x32xf32>
    %59 = vector.broadcast %58 : vector<1x32xf32> to vector<16x32xf32>
    %60 = arith.addf %57, %59 : vector<16x32xf32>
    %cst_28 = arith.constant 0.000000e+00 : f32
    %61 = vector.broadcast %cst_28 : f32 to vector<16x32xf32>
    %62 = arith.maximumf %60, %61 : vector<16x32xf32>
    %c136 = arith.constant 136 : index
    %c0_29 = arith.constant 0 : index
    %63 = vector.load %arg2[%c136, %c0_29] : memref<424x384xf32, #tpu.memory_space<vmem>>, vector<32x384xf32>
    %c0_30 = arith.constant 0 : index
    %c512 = arith.constant 512 : index
    %64 = vector.load %arg3[%c0_30, %c512] : memref<1x1408xf32, #tpu.memory_space<vmem>>, vector<1x384xf32>
    %cst_31 = arith.constant dense<0.000000e+00> : vector<16x384xf32>
    %65 = tpu.matmul %62, %63, %cst_31 {dimension_numbers = #tpu.dot_dimension_numbers<[1], [0], [0], [1], [0, 0, 1, 1], [], []>} : vector<16x32xf32>, vector<32x384xf32>, vector<16x384xf32> -> vector<16x384xf32>
    %66 = vector.broadcast %64 : vector<1x384xf32> to vector<16x384xf32>
    %67 = arith.addf %65, %66 : vector<16x384xf32>
    %68 = vector.extract_strided_slice %67 {offsets = [0, 0], sizes = [16, 128], strides = [1, 1]} : vector<16x384xf32> to vector<16x128xf32>
    %cst_32 = arith.constant 5.000000e-01 : f32
    %69 = vector.broadcast %cst_32 : f32 to vector<16x128xf32>
    %70 = arith.mulf %69, %68 : vector<16x128xf32>
    %71 = math.tanh %70 : vector<16x128xf32>
    %cst_33 = arith.constant 5.000000e-01 : f32
    %72 = vector.broadcast %cst_33 : f32 to vector<16x128xf32>
    %73 = arith.mulf %72, %71 : vector<16x128xf32>
    %cst_34 = arith.constant 5.000000e-01 : f32
    %74 = vector.broadcast %cst_34 : f32 to vector<16x128xf32>
    %75 = arith.addf %73, %74 : vector<16x128xf32>
    %76 = vector.extract_strided_slice %67 {offsets = [0, 128], sizes = [16, 128], strides = [1, 1]} : vector<16x384xf32> to vector<16x128xf32>
    %77 = math.tanh %76 : vector<16x128xf32>
    %78 = vector.extract_strided_slice %67 {offsets = [0, 256], sizes = [16, 128], strides = [1, 1]} : vector<16x384xf32> to vector<16x128xf32>
    %cst_35 = arith.constant 5.000000e-01 : f32
    %79 = vector.broadcast %cst_35 : f32 to vector<16x128xf32>
    %80 = arith.mulf %79, %78 : vector<16x128xf32>
    %81 = math.tanh %80 : vector<16x128xf32>
    %cst_36 = arith.constant 5.000000e-01 : f32
    %82 = vector.broadcast %cst_36 : f32 to vector<16x128xf32>
    %83 = arith.mulf %82, %81 : vector<16x128xf32>
    %cst_37 = arith.constant 5.000000e-01 : f32
    %84 = vector.broadcast %cst_37 : f32 to vector<16x128xf32>
    %85 = arith.addf %83, %84 : vector<16x128xf32>
    %86 = arith.mulf %75, %77 : vector<16x128xf32>
    %87 = math.tanh %86 : vector<16x128xf32>
    %88 = arith.mulf %85, %87 : vector<16x128xf32>
    %c168 = arith.constant 168 : index
    %c0_38 = arith.constant 0 : index
    %89 = vector.load %arg2[%c168, %c0_38] : memref<424x384xf32, #tpu.memory_space<vmem>>, vector<128x384xf32>
    %c0_39 = arith.constant 0 : index
    %c896 = arith.constant 896 : index
    %90 = vector.load %arg3[%c0_39, %c896] : memref<1x1408xf32, #tpu.memory_space<vmem>>, vector<1x384xf32>
    %cst_40 = arith.constant dense<0.000000e+00> : vector<16x384xf32>
    %91 = tpu.matmul %88, %89, %cst_40 {dimension_numbers = #tpu.dot_dimension_numbers<[1], [0], [0], [1], [0, 0, 1, 1], [], []>} : vector<16x128xf32>, vector<128x384xf32>, vector<16x384xf32> -> vector<16x384xf32>
    %92 = vector.broadcast %90 : vector<1x384xf32> to vector<16x384xf32>
    %93 = arith.addf %91, %92 : vector<16x384xf32>
    %94 = vector.extract_strided_slice %93 {offsets = [0, 0], sizes = [16, 128], strides = [1, 1]} : vector<16x384xf32> to vector<16x128xf32>
    %cst_41 = arith.constant 5.000000e-01 : f32
    %95 = vector.broadcast %cst_41 : f32 to vector<16x128xf32>
    %96 = arith.mulf %95, %94 : vector<16x128xf32>
    %97 = math.tanh %96 : vector<16x128xf32>
    %cst_42 = arith.constant 5.000000e-01 : f32
    %98 = vector.broadcast %cst_42 : f32 to vector<16x128xf32>
    %99 = arith.mulf %98, %97 : vector<16x128xf32>
    %cst_43 = arith.constant 5.000000e-01 : f32
    %100 = vector.broadcast %cst_43 : f32 to vector<16x128xf32>
    %101 = arith.addf %99, %100 : vector<16x128xf32>
    %102 = vector.extract_strided_slice %93 {offsets = [0, 128], sizes = [16, 128], strides = [1, 1]} : vector<16x384xf32> to vector<16x128xf32>
    %103 = math.tanh %102 : vector<16x128xf32>
    %104 = vector.extract_strided_slice %93 {offsets = [0, 256], sizes = [16, 128], strides = [1, 1]} : vector<16x384xf32> to vector<16x128xf32>
    %cst_44 = arith.constant 5.000000e-01 : f32
    %105 = vector.broadcast %cst_44 : f32 to vector<16x128xf32>
    %106 = arith.mulf %105, %104 : vector<16x128xf32>
    %107 = math.tanh %106 : vector<16x128xf32>
    %cst_45 = arith.constant 5.000000e-01 : f32
    %108 = vector.broadcast %cst_45 : f32 to vector<16x128xf32>
    %109 = arith.mulf %108, %107 : vector<16x128xf32>
    %cst_46 = arith.constant 5.000000e-01 : f32
    %110 = vector.broadcast %cst_46 : f32 to vector<16x128xf32>
    %111 = arith.addf %109, %110 : vector<16x128xf32>
    %112 = arith.mulf %101, %103 : vector<16x128xf32>
    %113 = math.tanh %112 : vector<16x128xf32>
    %114 = arith.mulf %111, %113 : vector<16x128xf32>
    %c296 = arith.constant 296 : index
    %c0_47 = arith.constant 0 : index
    %115 = vector.load %arg2[%c296, %c0_47] : memref<424x384xf32, #tpu.memory_space<vmem>>, vector<128x128xf32>
    %cst_48 = arith.constant dense<0.000000e+00> : vector<16x128xf32>
    %116 = tpu.matmul %114, %115, %cst_48 {dimension_numbers = #tpu.dot_dimension_numbers<[1], [0], [0], [1], [0, 0, 1, 1], [], []>} : vector<16x128xf32>, vector<128x128xf32>, vector<16x128xf32> -> vector<16x128xf32>
    %c0_49 = arith.constant 0 : index
    %c1280 = arith.constant 1280 : index
    %117 = vector.load %arg3[%c0_49, %c1280] : memref<1x1408xf32, #tpu.memory_space<vmem>>, vector<1x128xf32>
    %118 = vector.broadcast %117 : vector<1x128xf32> to vector<16x128xf32>
    %119 = arith.addf %116, %118 : vector<16x128xf32>
    %c0_50 = arith.constant 0 : index
    %c0_51 = arith.constant 0 : index
    %120 = vector.load %arg4[%c0_50, %c0_51] : memref<16x128xf32, #tpu.memory_space<vmem>>, vector<16x128xf32>
    tpu.vector_store %arg4[%c0_50, %c0_51], %119 {strides = array<i32>} : memref<16x128xf32, #tpu.memory_space<vmem>>, vector<16x128xf32>,
    return
  }
}

</mosaic_0001>

<llo_original>
// kernel: tpu_custom_call.1
$region0: #{tpu_custom_call.1}
  #allocation0 [shape = 'u32[]', space=smem, size = 0x4, offset = 0x4, fixed_abs, tag = 'smem constant byte address 0x4 - core index']
  #allocation1 [shape = 'u32[72,128]{1,0:T(1,128)}', space=vmem, size = 0x9000, scoped, tag = 'internal scratch']
  %s0 = inlined_call_operand.vmem [shape: f32[16,8], index: 0, kind: input, shape index: {}]
  %s1 = inlined_call_operand.vmem [shape: bf16[16,16], index: 1, kind: input, shape index: {}]
  %s2 = inlined_call_operand.hbm [shape: f32[424,384], index: 2, kind: input, shape index: {}]
  %s3 = inlined_call_operand.vmem [shape: f32[1,1408], index: 3, kind: input, shape index: {}]
  %s4 = inlined_call_operand.hbm [shape: f32[16,128], index: 4, kind: output, shape index: {}]
  %s5 = sld [smem:[#allocation0]]
  $region30: #{tpu_custom_call.1} parent=0
    _
  %s7 = ssub.s32 1, %s5
  %s8 = scalar_select 0, %s7, %s5
  $region1: #{tpu_custom_call.1} parent=0
    #allocation2 [shape = 'u8[651264]{0}', space=vmem, size = 0x9f000, scoped, tag = 'input window, operand 2, single buffered']
    #allocation3 [shape = 's32[1]{0}', space=sflag, size = 0x4, scoped, tag = 'scoped memory for tpu_custom_call.1']
    #allocation4 [shape = 's32[1]{0}', space=sflag, size = 0x4, scoped, tag = 'scoped memory for tpu_custom_call.1']
    #allocation5 [shape = 'u8[8192]{0}', space=vmem, size = 0x2000, scoped, tag = 'output window, operand 0, single buffered']
    %9 = vsyncpa [#allocation3], 0
    %10 = vsyncpa [#allocation4], 0
    // Predicated region
    $region2: #{tpu_custom_call.1} parent=1 // pred_check
      _
    $region3: #{tpu_custom_call.1} parent=1 // pred_check_branch
      %12 = sbr.rel (0) target = $region5
    $region4: #{tpu_custom_call.1} parent=1 // pred_region
      _
    $region5: #{tpu_custom_call.1} parent=1 // pred_fallthru
      _
    // Predicated region
    $region6: #{tpu_custom_call.1} parent=1 // pred_check
      _
    $region7: #{tpu_custom_call.1} parent=1 // pred_check_branch
      %14 = sbr.rel (0) target = $region9
    $region8: #{tpu_custom_call.1} parent=1 // pred_region
      _
    $region9: #{tpu_custom_call.1} parent=1 // pred_fallthru
      _
    // Predicated region
    $region10: #{tpu_custom_call.1} parent=1 // pred_check
      _
    $region11: #{tpu_custom_call.1} parent=1 // pred_check_branch
      %16 = sbr.rel (0) target = $region13
    $region12: #{tpu_custom_call.1} parent=1 // pred_region
      %18 = vsyncadd [#allocation3], 0
      %s19 = sshll.u32 %s2, 4
      %s20 = int_to_ptr.hbm [resolvable:$true] %s19
      %s21 = sshll.u32 [#allocation2], 4
      %s22 = int_to_ptr.vmem [resolvable:$true] %s21
      %27 = dma.hbm_to_vmem [thread:$0]  %s20, 20352, %s22, [#allocation3], 384, 384, 24
    $region13: #{tpu_custom_call.1} parent=1 // pred_fallthru
      _
    // Predicated region
    $region14: #{tpu_custom_call.1} parent=1 // pred_check
      _
    $region15: #{tpu_custom_call.1} parent=1 // pred_check_branch
      %29 = sbr.rel (0) target = $region17
    $region16: #{tpu_custom_call.1} parent=1 // pred_region
      _
    $region17: #{tpu_custom_call.1} parent=1 // pred_fallthru
      _
    // Predicated region
    $region18: #{tpu_custom_call.1} parent=1 // pred_check
      _
    $region19: #{tpu_custom_call.1} parent=1 // pred_check_branch
      %31 = sbr.rel (0) target = $region21
    $region20: #{tpu_custom_call.1} parent=1 // pred_region
      %33 = dma.done [#allocation3], 20352
    $region21: #{tpu_custom_call.1} parent=1 // pred_fallthru
      _
    %v35 = vld [vmem:[%s1] sm:$0xf]
    %v36 = vld [vmem:[%s1 + $0x4] sm:$0xf]
    %v37 = vld [vmem:[%s0] sm:$0xff]
    %v38 = vld [vmem:[%s0 + $0x8] sm:$0xff]
    %v39 = vpack.c.bf16 %v38, %v37
    %v42 = vunpack.c.l.b16 %v35
    %v43 = vunpack.c.l.b16 %v36
    %v44 = vpack.c.b16 %v43, %v42
    %vm45 = vcmask 130048
    %v47 = vsel %vm45, %v44, 0
    %49 = vmatpush.bf16.msra.mxu0 0
    %50 = vmatpush.bf16.msra.mxu0 0
    %51 = vmatpush.bf16.msra.mxu0 0
    %52 = vmatpush.bf16.msra.mxu0 0
    %53 = vmatpush.bf16.msra.mxu0 0
    %54 = vmatpush.bf16.msra.mxu0 0
    %55 = vmatpush.bf16.msra.mxu0 0
    %56 = vmatpush.bf16.msra.mxu0 %v39
    %57 = vmatmul.bf16.gmra.mxu0 %v47
    %v58 = vpop.f32.mrf.mxu0
    %v59 = vadd.f32 0.0, %v58
    %v60 = vpop.f32.mrf.mxu0
    %v61 = vadd.f32 0.0, %v60
    %62 = vdwg.mxu0
    %v63 = vld [vmem:[#allocation2] sm:$0xff]
    %v64 = vld [vmem:[%s3] sm:$0x1]
    %v66 = vperm.slane %v64, 0
    %vm68 = vcmask 64512
    %v70 = vsel %vm68, %v59, 0
    %v73 = vsel %vm68, %v61, 0
    %75 = vmatpush.msra.mxu0 0.0
    %76 = vmatpush.msra.mxu0 0.0
    %77 = vmatpush.msra.mxu0 0.0
    %78 = vmatpush.msra.mxu0 0.0
    %79 = vmatpush.msra.mxu0 0.0
    %80 = vmatpush.msra.mxu0 0.0
    %81 = vmatpush.msra.mxu0 0.0
    %82 = vmatpush.msra.mxu0 0.0
    %83 = vmatpush.msra.mxu0 0.0
    %84 = vmatpush.msra.mxu0 0.0
    %85 = vmatpush.msra.mxu0 0.0
    %86 = vmatpush.msra.mxu0 0.0
    %87 = vmatpush.msra.mxu0 0.0
    %88 = vmatpush.msra.mxu0 0.0
    %89 = vmatpush.msra.mxu0 0.0
    %90 = vmatpush.msra.mxu0 %v63
    %91 = vmatmul.f32.gmra.mxu0 %v70
    %v92 = vpop.f32.mrf.mxu0
    %v93 = vadd.f32 %v66, %v92
    %94 = vmatmul.f32.gmra.mxu0 %v73
    %v95 = vpop.f32.mrf.mxu0
    %v96 = vadd.f32 %v66, %v95
    %97 = vdwg.mxu0
    %v98 = vmax.f32 %v93, 0.0
    %v99 = vmax.f32 %v96, 0.0
    %v100 = vld [vmem:[#allocation2 + $0x18] sm:$0xff]
    %v101 = vld [vmem:[#allocation2 + $0x30] sm:$0xff]
    %v102 = vld [vmem:[#allocation2 + $0x48] sm:$0xff]
    %v103 = vld [vmem:[#allocation2 + $0x60] sm:$0xff]
    %v104 = vld [vmem:[#allocation2 + $0x78] sm:$0xff]
    %v105 = vld [vmem:[#allocation2 + $0x90] sm:$0xff]
    %v106 = vld [vmem:[#allocation2 + $0xa8] sm:$0xff]
    %v107 = vld [vmem:[#allocation2 + $0xc0] sm:$0xff]
    %v108 = vld [vmem:[%s3 + $0x1] sm:$0x1]
    %vm109 = vcmask 523264
    %v111 = vsel %vm109, %v98, 0
    %v114 = vsel %vm109, %v99, 0
    %116 = vmatpush.msra.mxu0 0.0
    %117 = vmatpush.msra.mxu0 0.0
    %118 = vmatpush.msra.mxu0 0.0
    %119 = vmatpush.msra.mxu0 0.0
    %120 = vmatpush.msra.mxu0 0.0
    %121 = vmatpush.msra.mxu0 0.0
    %122 = vmatpush.msra.mxu0 0.0
    %123 = vmatpush.msra.mxu0 0.0
    %124 = vmatpush.msra.mxu0 %v107
    %125 = vmatpush.msra.mxu0 %v106
    %126 = vmatpush.msra.mxu0 %v105
    %127 = vmatpush.msra.mxu0 %v104
    %128 = vmatpush.msra.mxu0 %v103
    %129 = vmatpush.msra.mxu0 %v102
    %130 = vmatpush.msra.mxu0 %v101
    %131 = vmatpush.msra.mxu0 %v100
    %132 = vmatmul.f32.gmra.mxu0 %v111
    %v133 = vpop.f32.mrf.mxu0
    %v134 = vadd.f32 0.0, %v133
    %135 = vmatmul.f32.gmra.mxu0 %v114
    %v136 = vpop.f32.mrf.mxu0
    %v137 = vadd.f32 0.0, %v136
    %138 = vdwg.mxu0
    %v139 = vpack.c.bf16 %v137, %v134
    %v141 = vperm.slane %v108, 0
    %143 = vmatpush.bf16.msra.mxu0 0
    %144 = vmatpush.bf16.msra.mxu0 0
    %145 = vmatpush.bf16.msra.mxu0 0
    %146 = vmatpush.bf16.msra.mxu0 0
    %147 = vmatpush.bf16.msra.mxu0 0
    %148 = vmatpush.bf16.msra.mxu0 0
    %149 = vmatpush.bf16.msra.mxu0 0
    %150 = vmatpush.bf16.msra.mxu0 %v139
    %151 = vmatmul.bf16.gmra.mxu0 %v47
    %v152 = vpop.f32.mrf.mxu0
    %v153 = vadd.f32 %v141, %v152
    %v154 = vpop.f32.mrf.mxu0
    %v155 = vadd.f32 %v141, %v154
    %156 = vdwg.mxu0
    %v157 = vmax.f32 %v153, 0.0
    %v158 = vmax.f32 %v155, 0.0
    %v159 = vld [vmem:[#allocation2 + $0xd8] sm:$0xff]
    %v160 = vld [vmem:[#allocation2 + $0xf0] sm:$0xff]
    %v161 = vld [vmem:[#allocation2 + $0x108] sm:$0xff]
    %v162 = vld [vmem:[#allocation2 + $0x120] sm:$0xff]
    %v163 = vld [vmem:[%s3 + $0x2] sm:$0x1]
    %vm164 = vcmask 261120
    %v166 = vsel %vm164, %v157, 0
    %v169 = vsel %vm164, %v158, 0
    %171 = vmatpush.msra.mxu0 0.0
    %172 = vmatpush.msra.mxu0 0.0
    %173 = vmatpush.msra.mxu0 0.0
    %174 = vmatpush.msra.mxu0 0.0
    %175 = vmatpush.msra.mxu0 0.0
    %176 = vmatpush.msra.mxu0 0.0
    %177 = vmatpush.msra.mxu0 0.0
    %178 = vmatpush.msra.mxu0 0.0
    %179 = vmatpush.msra.mxu0 0.0
    %180 = vmatpush.msra.mxu0 0.0
    %181 = vmatpush.msra.mxu0 0.0
    %182 = vmatpush.msra.mxu0 0.0
    %183 = vmatpush.msra.mxu0 %v162
    %184 = vmatpush.msra.mxu0 %v161
    %185 = vmatpush.msra.mxu0 %v160
    %186 = vmatpush.msra.mxu0 %v159
    %187 = vmatmul.f32.gmra.mxu0 %v166
    %v188 = vpop.f32.mrf.mxu0
    %v189 = vadd.f32 0.0, %v188
    %190 = vmatmul.f32.gmra.mxu0 %v169
    %v191 = vpop.f32.mrf.mxu0
    %v192 = vadd.f32 0.0, %v191
    %193 = vdwg.mxu0
    %v194 = vpack.c.bf16 %v192, %v189
    %v196 = vperm.slane %v163, 0
    %198 = vmatpush.bf16.msra.mxu0 0
    %199 = vmatpush.bf16.msra.mxu0 0
    %200 = vmatpush.bf16.msra.mxu0 0
    %201 = vmatpush.bf16.msra.mxu0 0
    %202 = vmatpush.bf16.msra.mxu0 0
    %203 = vmatpush.bf16.msra.mxu0 0
    %204 = vmatpush.bf16.msra.mxu0 0
    %205 = vmatpush.bf16.msra.mxu0 %v194
    %206 = vmatmul.bf16.gmra.mxu0 %v47
    %v207 = vpop.f32.mrf.mxu0
    %v208 = vadd.f32 %v196, %v207
    %v209 = vpop.f32.mrf.mxu0
    %v210 = vadd.f32 %v196, %v209
    %211 = vdwg.mxu0
    %v212 = vmax.f32 %v208, 0.0
    %v213 = vmax.f32 %v210, 0.0
    %v214 = vld [vmem:[#allocation2 + $0x138] sm:$0xff]
    %v215 = vld [vmem:[#allocation2 + $0x150] sm:$0xff]
    %v216 = vld [vmem:[#allocation2 + $0x168] sm:$0xff]
    %v217 = vld [vmem:[#allocation2 + $0x180] sm:$0xff]
    %v219 = vsel %vm164, %v212, 0
    %v222 = vsel %vm164, %v213, 0
    %224 = vmatpush.msra.mxu0 0.0
    %225 = vmatpush.msra.mxu0 0.0
    %226 = vmatpush.msra.mxu0 0.0
    %227 = vmatpush.msra.mxu0 0.0
    %228 = vmatpush.msra.mxu0 0.0
    %229 = vmatpush.msra.mxu0 0.0
    %230 = vmatpush.msra.mxu0 0.0
    %231 = vmatpush.msra.mxu0 0.0
    %232 = vmatpush.msra.mxu0 0.0
    %233 = vmatpush.msra.mxu0 0.0
    %234 = vmatpush.msra.mxu0 0.0
    %235 = vmatpush.msra.mxu0 0.0
    %236 = vmatpush.msra.mxu0 %v217
    %237 = vmatpush.msra.mxu0 %v216
    %238 = vmatpush.msra.mxu0 %v215
    %239 = vmatpush.msra.mxu0 %v214
    %240 = vmatmul.f32.gmra.mxu0 %v219
    %v241 = vpop.f32.mrf.mxu0
    %v242 = vadd.f32 0.0, %v241
    %243 = vmatmul.f32.gmra.mxu0 %v222
    %v244 = vpop.f32.mrf.mxu0
    %v245 = vadd.f32 0.0, %v244
    %246 = vdwg.mxu0
    %249 = vrot.lane.b32.xlu0 %v242, 96
    %v250 = vpop.permute.xlu0 %249
    %251 = vrot.lane.b32.xlu0 %v245, 96
    %v252 = vpop.permute.xlu0 %251
    %255 = vxpose.xlu0.b32.start [1/16] %v250, 128
    %256 = vxpose.xlu0.b32.cont [2/16] %v252, 128
    %257 = vxpose.xlu0.b32.cont [3/16] 0.0, 128
    %258 = vxpose.xlu0.b32.cont [4/16] 0.0, 128
    %259 = vxpose.xlu0.b32.cont [5/16] 0.0, 128
    %260 = vxpose.xlu0.b32.cont [6/16] 0.0, 128
    %261 = vxpose.xlu0.b32.cont [7/16] 0.0, 128
    %262 = vxpose.xlu0.b32.cont [8/16] 0.0, 128
    %263 = vxpose.xlu0.b32.cont [9/16] 0.0, 128
    %264 = vxpose.xlu0.b32.cont [10/16] 0.0, 128
    %265 = vxpose.xlu0.b32.cont [11/16] 0.0, 128
    %266 = vxpose.xlu0.b32.cont [12/16] 0.0, 128
    %267 = vxpose.xlu0.b32.cont [13/16] 0.0, 128
    %268 = vxpose.xlu0.b32.cont [14/16] 0.0, 128
    %269 = vxpose.xlu0.b32.cont [15/16] 0.0, 128
    %270 = vxpose.xlu0.b32.end [16/16] 0.0, 128
    %v271 = vpop.trf.xlu0
    %v272 = vpop.trf.xlu0
    %v273 = vpop.trf.xlu0
    %v274 = vpop.trf.xlu0
    %v275 = vpop.trf.xlu0
    %v276 = vpop.trf.xlu0
    %v277 = vpop.trf.xlu0
    %v278 = vpop.trf.xlu0
    %v279 = vpop.trf.xlu0
    %v280 = vpop.trf.xlu0
    %v281 = vpop.trf.xlu0
    %v282 = vpop.trf.xlu0
    %v283 = vpop.trf.xlu0
    %v284 = vpop.trf.xlu0
    %v285 = vpop.trf.xlu0
    %v286 = vpop.trf.xlu0
    %287 = vset.pattern.permute.xlu0 33
    %288 = vperm.xlu0 %287, %v242
    %v289 = vpop.permute.xlu0 %288
    %291 = vset.pattern.permute.xlu0 33
    %292 = vperm.xlu0 %291, %v245
    %v293 = vpop.permute.xlu0 %292
    %v295 = vperm.slane %v271, 0
    %v296 = vadd.f32 %v289, %v295
    %v297 = vadd.f32 %v293, %v295
    %v298 = vunpack.c.l.bf16 %v35
    %v299 = vunpack.c.l.bf16 %v36
    %vm300 = vcmp.gt.f32.partialorder %v298, 0.0
    %vm301 = vcmp.gt.f32.partialorder %v299, 0.0
    %v302 = vmul.f32 %v296, 0.2
    %v303 = vmul.f32 %v297, 0.2
    %v304 = vmax.f32 %v296, %v302
    %v305 = vmax.f32 %v297, %v303
    %v306 = vsel %vm300, %v304, -1e+30
    %v307 = vsel %vm301, %v305, -1e+30
    %v308 = vsel %vm45, %v306, -inf
    %309 = vmax.xlane.f32.xlu0 %v308
    %v310 = vpop.xlane.xlu0 %309
    %v311 = vsel %vm45, %v307, -inf
    %312 = vmax.xlane.f32.xlu0 %v311
    %v313 = vpop.xlane.xlu0 %312
    %v314 = vsub.f32 %v306, %v310
    %v315 = vsub.f32 %v307, %v313
    %v316 = vmul.f32 %v314, 1.442695
    %v317 = vpow.pop %v316
    %v318 = vmul.f32 %v315, 1.442695
    %v319 = vpow.pop %v318
    %v320 = vsel %vm45, %v317, 0.0
    %321 = vadd.xlane.f32.xlu0 %v320
    %v322 = vpop.xlane.xlu0 %321
    %v323 = vsel %vm45, %v319, 0.0
    %324 = vadd.xlane.f32.xlu0 %v323
    %v325 = vpop.xlane.xlu0 %324
    %v326 = vrcp.pop %v322
    %v327 = vrcp.pop %v325
    %v328 = vmul.f32 %v317, %v326
    %v329 = vmul.f32 %v319, %v327
    %v330 = vpack.c.bf16 %v329, %v328
    %v331 = vpack.c.bf16 %v245, %v242
    %v332 = vld [vmem:[%s3 + $0x3] sm:$0x1]
    %v334 = vperm.slane %v332, 0
    %v337 = vsel %vm45, %v330, 0
    %339 = vmatpush.bf16.msra.mxu0 0
    %340 = vmatpush.bf16.msra.mxu0 0
    %341 = vmatpush.bf16.msra.mxu0 0
    %342 = vmatpush.bf16.msra.mxu0 0
    %343 = vmatpush.bf16.msra.mxu0 0
    %344 = vmatpush.bf16.msra.mxu0 0
    %345 = vmatpush.bf16.msra.mxu0 0
    %346 = vmatpush.bf16.msra.mxu0 %v331
    %347 = vmatmul.bf16.gmra.mxu0 %v337
    %v348 = vpop.f32.mrf.mxu0
    %v349 = vadd.f32 %v334, %v348
    %v350 = vpop.f32.mrf.mxu0
    %v351 = vadd.f32 %v334, %v350
    %352 = vdwg.mxu0
    %v353 = vmax.f32 %v349, 0.0
    %v354 = vmax.f32 %v351, 0.0
    %v355 = vld [vmem:[#allocation2 + $0x198] sm:$0xff]
    %v356 = vld [vmem:[#allocation2 + $0x1a0] sm:$0xff]
    %v357 = vld [vmem:[#allocation2 + $0x1a8] sm:$0xff]
    %v358 = vld [vmem:[#allocation2 + $0x1b0] sm:$0xff]
    %v359 = vld [vmem:[#allocation2 + $0x1b8] sm:$0xff]
    %v360 = vld [vmem:[#allocation2 + $0x1c0] sm:$0xff]
    %v361 = vld [vmem:[#allocation2 + $0x1c8] sm:$0xff]
    %v362 = vld [vmem:[#allocation2 + $0x1d0] sm:$0xff]
    %v363 = vld [vmem:[#allocation2 + $0x1d8] sm:$0xff]
    %v364 = vld [vmem:[#allocation2 + $0x1e0] sm:$0xff]
    %v365 = vld [vmem:[#allocation2 + $0x1e8] sm:$0xff]
    %v366 = vld [vmem:[#allocation2 + $0x1f0] sm:$0xff]
    %v367 = vld [vmem:[%s3 + $0x4] sm:$0x7]
    %v369 = vperm.slane %v367, 0
    %v370 = vperm.slane %v367, 1
    %v371 = vperm.slane %v367, 2
    %v376 = vsel %vm164, %v353, 0
    %v379 = vsel %vm164, %v354, 0
    %381 = vmatpush.msra.mxu0 0.0
    %382 = vmatpush.msra.mxu0 0.0
    %383 = vmatpush.msra.mxu0 0.0
    %384 = vmatpush.msra.mxu0 0.0
    %385 = vmatpush.msra.mxu0 0.0
    %386 = vmatpush.msra.mxu0 0.0
    %387 = vmatpush.msra.mxu0 0.0
    %388 = vmatpush.msra.mxu0 0.0
    %389 = vmatpush.msra.mxu0 0.0
    %390 = vmatpush.msra.mxu0 0.0
    %391 = vmatpush.msra.mxu0 0.0
    %392 = vmatpush.msra.mxu0 0.0
    %393 = vmatpush.msra.mxu0 %v364
    %394 = vmatpush.msra.mxu0 %v361
    %395 = vmatpush.msra.mxu0 %v358
    %396 = vmatpush.msra.mxu0 %v355
    %397 = vmatmul.f32.gmra.mxu0 %v376
    %v398 = vpop.f32.mrf.mxu0
    %v399 = vadd.f32 %v369, %v398
    %400 = vmatmul.f32.gmra.mxu0 %v379
    %v401 = vpop.f32.mrf.mxu0
    %v402 = vadd.f32 %v369, %v401
    %403 = vdwg.mxu0
    %404 = vmatpush.msra.mxu0 0.0
    %405 = vmatpush.msra.mxu0 0.0
    %406 = vmatpush.msra.mxu0 0.0
    %407 = vmatpush.msra.mxu0 0.0
    %408 = vmatpush.msra.mxu0 0.0
    %409 = vmatpush.msra.mxu0 0.0
    %410 = vmatpush.msra.mxu0 0.0
    %411 = vmatpush.msra.mxu0 0.0
    %412 = vmatpush.msra.mxu0 0.0
    %413 = vmatpush.msra.mxu0 0.0
    %414 = vmatpush.msra.mxu0 0.0
    %415 = vmatpush.msra.mxu0 0.0
    %416 = vmatpush.msra.mxu0 %v365
    %417 = vmatpush.msra.mxu0 %v362
    %418 = vmatpush.msra.mxu0 %v359
    %419 = vmatpush.msra.mxu0 %v356
    %420 = vmatmul.f32.gmra.mxu0 %v376
    %v421 = vpop.f32.mrf.mxu0
    %v422 = vadd.f32 %v370, %v421
    %423 = vmatmul.f32.gmra.mxu0 %v379
    %v424 = vpop.f32.mrf.mxu0
    %v425 = vadd.f32 %v370, %v424
    %426 = vdwg.mxu0
    %427 = vmatpush.msra.mxu0 0.0
    %428 = vmatpush.msra.mxu0 0.0
    %429 = vmatpush.msra.mxu0 0.0
    %430 = vmatpush.msra.mxu0 0.0
    %431 = vmatpush.msra.mxu0 0.0
    %432 = vmatpush.msra.mxu0 0.0
    %433 = vmatpush.msra.mxu0 0.0
    %434 = vmatpush.msra.mxu0 0.0
    %435 = vmatpush.msra.mxu0 0.0
    %436 = vmatpush.msra.mxu0 0.0
    %437 = vmatpush.msra.mxu0 0.0
    %438 = vmatpush.msra.mxu0 0.0
    %439 = vmatpush.msra.mxu0 %v366
    %440 = vmatpush.msra.mxu0 %v363
    %441 = vmatpush.msra.mxu0 %v360
    %442 = vmatpush.msra.mxu0 %v357
    %443 = vmatmul.f32.gmra.mxu0 %v376
    %v444 = vpop.f32.mrf.mxu0
    %v445 = vadd.f32 %v371, %v444
    %446 = vmatmul.f32.gmra.mxu0 %v379
    %v447 = vpop.f32.mrf.mxu0
    %v448 = vadd.f32 %v371, %v447
    %449 = vdwg.mxu0
    %v450 = vmul.f32 %v399, 0.5
    %v451 = vmul.f32 %v402, 0.5
    %v452 = vtanh.pop %v450
    %v453 = vtanh.pop %v451
    %v454 = vmul.f32 %v452, 0.5
    %v455 = vmul.f32 %v453, 0.5
    %v456 = vadd.f32 %v454, 0.5
    %v457 = vadd.f32 %v455, 0.5
    %v458 = vtanh.pop %v422
    %v459 = vtanh.pop %v425
    %v460 = vmul.f32 %v445, 0.5
    %v461 = vmul.f32 %v448, 0.5
    %v462 = vtanh.pop %v460
    %v463 = vtanh.pop %v461
    %v464 = vmul.f32 %v462, 0.5
    %v465 = vmul.f32 %v463, 0.5
    %v466 = vadd.f32 %v464, 0.5
    %v467 = vadd.f32 %v465, 0.5
    %v468 = vmul.f32 %v456, %v458
    %v469 = vmul.f32 %v457, %v459
    %v470 = vtanh.pop %v468
    %v471 = vtanh.pop %v469
    %v472 = vmul.f32 %v466, %v470
    %v473 = vmul.f32 %v467, %v471
    %v474 = vld [vmem:[#allocation2 + $0x1f8] sm:$0xff]
    %v475 = vld [vmem:[#allocation2 + $0x200] sm:$0xff]
    %v476 = vld [vmem:[#allocation2 + $0x208] sm:$0xff]
    %v477 = vld [vmem:[#allocation2 + $0x210] sm:$0xff]
    %v478 = vld [vmem:[#allocation2 + $0x218] sm:$0xff]
    %v479 = vld [vmem:[#allocation2 + $0x220] sm:$0xff]
    %v480 = vld [vmem:[#allocation2 + $0x228] sm:$0xff]
    %v481 = vld [vmem:[#allocation2 + $0x230] sm:$0xff]
    %v482 = vld [vmem:[#allocation2 + $0x238] sm:$0xff]
    %v483 = vld [vmem:[#allocation2 + $0x240] sm:$0xff]
    %v484 = vld [vmem:[#allocation2 + $0x248] sm:$0xff]
    %v485 = vld [vmem:[#allocation2 + $0x250] sm:$0xff]
    %v486 = vld [vmem:[#allocation2 + $0x258] sm:$0xff]
    %v487 = vld [vmem:[#allocation2 + $0x260] sm:$0xff]
    %v488 = vld [vmem:[#allocation2 + $0x268] sm:$0xff]
    %v489 = vld [vmem:[#allocation2 + $0x270] sm:$0xff]
    %v490 = vld [vmem:[#allocation2 + $0x278] sm:$0xff]
    %v491 = vld [vmem:[#allocation2 + $0x280] sm:$0xff]
    %v492 = vld [vmem:[#allocation2 + $0x288] sm:$0xff]
    %v493 = vld [vmem:[#allocation2 + $0x290] sm:$0xff]
    %v494 = vld [vmem:[#allocation2 + $0x298] sm:$0xff]
    %v495 = vld [vmem:[#allocation2 + $0x2a0] sm:$0xff]
    %v496 = vld [vmem:[#allocation2 + $0x2a8] sm:$0xff]
    %v497 = vld [vmem:[#allocation2 + $0x2b0] sm:$0xff]
    %v498 = vld [vmem:[#allocation2 + $0x2b8] sm:$0xff]
    %v499 = vld [vmem:[#allocation2 + $0x2c0] sm:$0xff]
    %v500 = vld [vmem:[#allocation2 + $0x2c8] sm:$0xff]
    %v501 = vld [vmem:[#allocation2 + $0x2d0] sm:$0xff]
    %v502 = vld [vmem:[#allocation2 + $0x2d8] sm:$0xff]
    %v503 = vld [vmem:[#allocation2 + $0x2e0] sm:$0xff]
    %v504 = vld [vmem:[#allocation2 + $0x2e8] sm:$0xff]
    %v505 = vld [vmem:[#allocation2 + $0x2f0] sm:$0xff]
    %v506 = vld [vmem:[#allocation2 + $0x2f8] sm:$0xff]
    %v507 = vld [vmem:[#allocation2 + $0x300] sm:$0xff]
    %v508 = vld [vmem:[#allocation2 + $0x308] sm:$0xff]
    %v509 = vld [vmem:[#allocation2 + $0x310] sm:$0xff]
    %v510 = vld [vmem:[#allocation2 + $0x318] sm:$0xff]
    %v511 = vld [vmem:[#allocation2 + $0x320] sm:$0xff]
    %v512 = vld [vmem:[#allocation2 + $0x328] sm:$0xff]
    %v513 = vld [vmem:[#allocation2 + $0x330] sm:$0xff]
    %v514 = vld [vmem:[#allocation2 + $0x338] sm:$0xff]
    %v515 = vld [vmem:[#allocation2 + $0x340] sm:$0xff]
    %v516 = vld [vmem:[#allocation2 + $0x348] sm:$0xff]
    %v517 = vld [vmem:[#allocation2 + $0x350] sm:$0xff]
    %v518 = vld [vmem:[#allocation2 + $0x358] sm:$0xff]
    %v519 = vld [vmem:[#allocation2 + $0x360] sm:$0xff]
    %v520 = vld [vmem:[#allocation2 + $0x368] sm:$0xff]
    %v521 = vld [vmem:[#allocation2 + $0x370] sm:$0xff]
    %v522 = vld [vmem:[%s3 + $0x7] sm:$0x7]
    %v524 = vperm.slane %v522, 0
    %v525 = vperm.slane %v522, 1
    %v526 = vperm.slane %v522, 2
    %530 = vmatpush.msra.mxu0 %v519
    %531 = vmatpush.msra.mxu0 %v516
    %532 = vmatpush.msra.mxu0 %v513
    %533 = vmatpush.msra.mxu0 %v510
    %534 = vmatpush.msra.mxu0 %v507
    %535 = vmatpush.msra.mxu0 %v504
    %536 = vmatpush.msra.mxu0 %v501
    %537 = vmatpush.msra.mxu0 %v498
    %538 = vmatpush.msra.mxu0 %v495
    %539 = vmatpush.msra.mxu0 %v492
    %540 = vmatpush.msra.mxu0 %v489
    %541 = vmatpush.msra.mxu0 %v486
    %542 = vmatpush.msra.mxu0 %v483
    %543 = vmatpush.msra.mxu0 %v480
    %544 = vmatpush.msra.mxu0 %v477
    %545 = vmatpush.msra.mxu0 %v474
    %546 = vmatmul.f32.gmra.mxu0 %v472
    %v547 = vpop.f32.mrf.mxu0
    %v548 = vadd.f32 %v524, %v547
    %549 = vmatmul.f32.gmra.mxu0 %v473
    %v550 = vpop.f32.mrf.mxu0
    %v551 = vadd.f32 %v524, %v550
    %552 = vdwg.mxu0
    %553 = vmatpush.msra.mxu0 %v520
    %554 = vmatpush.msra.mxu0 %v517
    %555 = vmatpush.msra.mxu0 %v514
    %556 = vmatpush.msra.mxu0 %v511
    %557 = vmatpush.msra.mxu0 %v508
    %558 = vmatpush.msra.mxu0 %v505
    %559 = vmatpush.msra.mxu0 %v502
    %560 = vmatpush.msra.mxu0 %v499
    %561 = vmatpush.msra.mxu0 %v496
    %562 = vmatpush.msra.mxu0 %v493
    %563 = vmatpush.msra.mxu0 %v490
    %564 = vmatpush.msra.mxu0 %v487
    %565 = vmatpush.msra.mxu0 %v484
    %566 = vmatpush.msra.mxu0 %v481
    %567 = vmatpush.msra.mxu0 %v478
    %568 = vmatpush.msra.mxu0 %v475
    %569 = vmatmul.f32.gmra.mxu0 %v472
    %v570 = vpop.f32.mrf.mxu0
    %v571 = vadd.f32 %v525, %v570
    %572 = vmatmul.f32.gmra.mxu0 %v473
    %v573 = vpop.f32.mrf.mxu0
    %v574 = vadd.f32 %v525, %v573
    %575 = vdwg.mxu0
    %576 = vmatpush.msra.mxu0 %v521
    %577 = vmatpush.msra.mxu0 %v518
    %578 = vmatpush.msra.mxu0 %v515
    %579 = vmatpush.msra.mxu0 %v512
    %580 = vmatpush.msra.mxu0 %v509
    %581 = vmatpush.msra.mxu0 %v506
    %582 = vmatpush.msra.mxu0 %v503
    %583 = vmatpush.msra.mxu0 %v500
    %584 = vmatpush.msra.mxu0 %v497
    %585 = vmatpush.msra.mxu0 %v494
    %586 = vmatpush.msra.mxu0 %v491
    %587 = vmatpush.msra.mxu0 %v488
    %588 = vmatpush.msra.mxu0 %v485
    %589 = vmatpush.msra.mxu0 %v482
    %590 = vmatpush.msra.mxu0 %v479
    %591 = vmatpush.msra.mxu0 %v476
    %592 = vmatmul.f32.gmra.mxu0 %v472
    %v593 = vpop.f32.mrf.mxu0
    %v594 = vadd.f32 %v526, %v593
    %595 = vmatmul.f32.gmra.mxu0 %v473
    %v596 = vpop.f32.mrf.mxu0
    %v597 = vadd.f32 %v526, %v596
    %598 = vdwg.mxu0
    %v599 = vmul.f32 %v548, 0.5
    %v600 = vmul.f32 %v551, 0.5
    %v601 = vtanh.pop %v599
    %v602 = vtanh.pop %v600
    %v603 = vmul.f32 %v601, 0.5
    %v604 = vmul.f32 %v602, 0.5
    %v605 = vadd.f32 %v603, 0.5
    %v606 = vadd.f32 %v604, 0.5
    %v607 = vtanh.pop %v571
    %v608 = vtanh.pop %v574
    %v609 = vmul.f32 %v594, 0.5
    %v610 = vmul.f32 %v597, 0.5
    %v611 = vtanh.pop %v609
    %v612 = vtanh.pop %v610
    %v613 = vmul.f32 %v611, 0.5
    %v614 = vmul.f32 %v612, 0.5
    %v615 = vadd.f32 %v613, 0.5
    %v616 = vadd.f32 %v614, 0.5
    %v617 = vmul.f32 %v605, %v607
    %v618 = vmul.f32 %v606, %v608
    %v619 = vtanh.pop %v617
    %v620 = vtanh.pop %v618
    %v621 = vmul.f32 %v615, %v619
    %v622 = vmul.f32 %v616, %v620
    %v623 = vld [vmem:[#allocation2 + $0x378] sm:$0xff]
    %v624 = vld [vmem:[#allocation2 + $0x390] sm:$0xff]
    %v625 = vld [vmem:[#allocation2 + $0x3a8] sm:$0xff]
    %v626 = vld [vmem:[#allocation2 + $0x3c0] sm:$0xff]
    %v627 = vld [vmem:[#allocation2 + $0x3d8] sm:$0xff]
    %v628 = vld [vmem:[#allocation2 + $0x3f0] sm:$0xff]
    %v629 = vld [vmem:[#allocation2 + $0x408] sm:$0xff]
    %v630 = vld [vmem:[#allocation2 + $0x420] sm:$0xff]
    %v631 = vld [vmem:[#allocation2 + $0x438] sm:$0xff]
    %v632 = vld [vmem:[#allocation2 + $0x450] sm:$0xff]
    %v633 = vld [vmem:[#allocation2 + $0x468] sm:$0xff]
    %v634 = vld [vmem:[#allocation2 + $0x480] sm:$0xff]
    %v635 = vld [vmem:[#allocation2 + $0x498] sm:$0xff]
    %v636 = vld [vmem:[#allocation2 + $0x4b0] sm:$0xff]
    %v637 = vld [vmem:[#allocation2 + $0x4c8] sm:$0xff]
    %v638 = vld [vmem:[#allocation2 + $0x4e0] sm:$0xff]
    %v639 = vld [vmem:[%s3 + $0xa] sm:$0x1]
    %v641 = vperm.slane %v639, 0
    %643 = vmatpush.msra.mxu0 %v638
    %644 = vmatpush.msra.mxu0 %v637
    %645 = vmatpush.msra.mxu0 %v636
    %646 = vmatpush.msra.mxu0 %v635
    %647 = vmatpush.msra.mxu0 %v634
    %648 = vmatpush.msra.mxu0 %v633
    %649 = vmatpush.msra.mxu0 %v632
    %650 = vmatpush.msra.mxu0 %v631
    %651 = vmatpush.msra.mxu0 %v630
    %652 = vmatpush.msra.mxu0 %v629
    %653 = vmatpush.msra.mxu0 %v628
    %654 = vmatpush.msra.mxu0 %v627
    %655 = vmatpush.msra.mxu0 %v626
    %656 = vmatpush.msra.mxu0 %v625
    %657 = vmatpush.msra.mxu0 %v624
    %658 = vmatpush.msra.mxu0 %v623
    %659 = vmatmul.f32.gmra.mxu0 %v621
    %v660 = vpop.f32.mrf.mxu0
    %v661 = vadd.f32 %v641, %v660
    %662 = vmatmul.f32.gmra.mxu0 %v622
    %v663 = vpop.f32.mrf.mxu0
    %v664 = vadd.f32 %v641, %v663
    %665 = vdwg.mxu0
    %666 = vst [vmem:[#allocation5] sm:$0xff] %v661
    %667 = vst [vmem:[#allocation5 + $0x8] sm:$0xff] %v664
    // Predicated region
    $region22: #{tpu_custom_call.1} parent=1 // pred_check
      _
    $region23: #{tpu_custom_call.1} parent=1 // pred_check_branch
      %669 = sbr.rel (0) target = $region25
    $region24: #{tpu_custom_call.1} parent=1 // pred_region
      %671 = vsyncadd [#allocation4], 0
      %s672 = sshll.u32 [#allocation5], 4
      %s673 = int_to_ptr.vmem [resolvable:$true] %s672
      %s674 = sshll.u32 %s4, 4
      %s675 = int_to_ptr.hbm [resolvable:$true] %s674
      %680 = dma.vmem_to_hbm [thread:$0]  %s673, 256, %s675, [#allocation4], 128, 128, 8
    $region25: #{tpu_custom_call.1} parent=1 // pred_fallthru
      _
    // Predicated region
    $region26: #{tpu_custom_call.1} parent=1 // pred_check
      _
    $region27: #{tpu_custom_call.1} parent=1 // pred_check_branch
      %682 = sbr.rel (0) target = $region29
    $region28: #{tpu_custom_call.1} parent=1 // pred_region
      %684 = dma.done [#allocation4], 256
    $region29: #{tpu_custom_call.1} parent=1 // pred_fallthru
      _
    %685 = vsyncpa [#allocation3], 1
    %686 = vsyncpa [#allocation4], 1

</llo_original>
